<compile_context>
chip_gen: v5e
topology: v5e:2x2
jax: 0.10.0
libtpu: 0.0.40
codegen_flags: <defaults>
</compile_context>

<pallas_src>
import functools

import jax
import jax.numpy as jnp
from jax.experimental import pallas as pl
from jax.experimental.pallas import tpu as pltpu


_LANE = 128
_DEFAULT_MAX_BLOCK_BYTES = 4 * 1024 * 1024   # budget for one (C, strip) block
# Above every chip's default scoped-VMEM limit, safely below v7x's 64 MiB
# physical VMEM; strip sizing keeps actual usage far under this.
_VMEM_LIMIT_BYTES = 48 * 1024 * 1024


def _pick_strip_len(hw, c, itemsize, max_block_bytes):
    """Largest lane-dense spatial strip that divides hw and fits the budget.

    The strip must be a multiple of 128 (unmasked vst) or equal the full
    extent (the only legal choice when hw is not a multiple of 128).
    """
    if hw % _LANE != 0:
        return hw
    budget_elems = max(_LANE, max_block_bytes // max(1, c * itemsize))
    strip = min(hw, (budget_elems // _LANE) * _LANE)
    strip = max(strip, _LANE)
    while hw % strip != 0:
        strip -= _LANE
    return strip


def _make_kernel(inv_hw):
    def kernel(x_ref, w1_ref, w2_ref, o_ref, sum_sc, max_sc, scale_sc):
        p = pl.program_id(1)   # phase: 0 = statistics, 1 = rescale
        s = pl.program_id(2)   # spatial strip index

        @pl.when(jnp.logical_and(p == 0, s == 0))
        def _init():
            sum_sc[...] = jnp.zeros_like(sum_sc)
            max_sc[...] = jnp.full_like(max_sc, -jnp.inf)

        @pl.when(p == 0)
        def _stats():
            # (C, strip): C on sublanes, spatial on lanes.  Both reductions
            # walk the same VMEM-resident strip; any f32 widening is confined
            # to this one strip (never the whole image).
            xf = x_ref[0].astype(jnp.float32)
            sum_sc[...] += jnp.sum(xf, axis=-1, keepdims=True)
            max_sc[...] = jnp.maximum(max_sc[...],
                                      jnp.max(xf, axis=-1, keepdims=True))

        @pl.when(jnp.logical_and(p == 1, s == 0))
        def _mlp():
            # Shared MLP in column form; PyTorch weights used natively.
            # mlp(a) + mlp(m) = w2 @ (relu(w1 @ a) + relu(w1 @ m)).
            w1 = w1_ref[...].astype(jnp.float32)            # (C//8, C)
            w2 = w2_ref[...].astype(jnp.float32)            # (C, C//8)
            avg_c = sum_sc[...] * inv_hw                    # (C, 1)
            max_c = max_sc[...]                             # (C, 1)
            h = (jnp.maximum(jnp.dot(w1, avg_c,
                                     preferred_element_type=jnp.float32), 0.0)
                 + jnp.maximum(jnp.dot(w1, max_c,
                                       preferred_element_type=jnp.float32), 0.0))
            z = jnp.dot(w2, h, preferred_element_type=jnp.float32)  # (C, 1)
            scale_sc[...] = 1.0 / (1.0 + jnp.exp(-z))       # sigmoid (exact)

        @pl.when(p == 1)
        def _rescale():
            # Multiply + store in the input dtype (no wholesale f32 upcast).
            x = x_ref[0]
            scale = scale_sc[...].astype(x.dtype)           # (C, 1) lane-bcast
            o_ref[0] = (x * scale).astype(o_ref.dtype)

    return kernel


def channel_attention_ncs(x_ncs, w1, w2, *,
                          max_block_bytes=_DEFAULT_MAX_BLOCK_BYTES):
    """Fused channel attention on (N, C, H*W) input (NCHW, spatial flattened).

    w1: (C//8, C)  -- nn.Linear(ch, ch // 8, bias=False).weight  (native)
    w2: (C, C//8)  -- nn.Linear(ch // 8, ch, bias=False).weight  (native)
    """
    N, C, HW = x_ncs.shape
    Cr = w1.shape[0]
    itemsize = jnp.dtype(x_ncs.dtype).itemsize
    strip = _pick_strip_len(HW, C, itemsize, max_block_bytes)
    n_strips = HW // strip
    kernel = _make_kernel(1.0 / float(HW))

    return pl.pallas_call(
        kernel,
        out_shape=jax.ShapeDtypeStruct((N, C, HW), x_ncs.dtype),
        grid=(N, 2, n_strips),
        in_specs=[
            # Same input block is used by both phases; when n_strips == 1 the
            # block index never changes within a batch element -> no refetch.
            pl.BlockSpec((1, C, strip), lambda n, p, s: (n, 0, s)),
            pl.BlockSpec((Cr, C), lambda n, p, s: (0, 0)),
            pl.BlockSpec((C, Cr), lambda n, p, s: (0, 0)),
        ],
        # Phase 0 parks the (unwritten) output window on block (n,0,0); it is
        # only copied back after phase 1's step s=0 has fully rewritten it, so
        # every output block is written to HBM exactly once.
        out_specs=pl.BlockSpec((1, C, strip), lambda n, p, s: (n, 0, s * p)),
        scratch_shapes=[
            pltpu.VMEM((C, 1), jnp.float32),   # running per-channel sum
            pltpu.VMEM((C, 1), jnp.float32),   # running per-channel max
            pltpu.VMEM((C, 1), jnp.float32),   # sigmoid scale
        ],
        compiler_params=pltpu.CompilerParams(
            dimension_semantics=("parallel", "arbitrary", "arbitrary"),
            vmem_limit_bytes=_VMEM_LIMIT_BYTES,
        ),
    )(x_ncs, w1, w2)


@functools.partial(jax.jit, static_argnames=("max_block_bytes",))
def channel_attention_forward(x_nchw, w1, w2, *,
                              max_block_bytes=_DEFAULT_MAX_BLOCK_BYTES):
    """PyTorch-layout entry point: x (N, C, H, W), weights in torch layout.

    Only a free contiguous reshape at the boundary -- no transposes, no extra
    HBM traffic.
    """
    N, C, H, W = x_nchw.shape
    x = x_nchw.reshape(N, C, H * W)
    out = channel_attention_ncs(x, w1, w2, max_block_bytes=max_block_bytes)
    return out.reshape(N, C, H, W)


def _reference_forward(x_nchw, w1, w2):
    """Pure-JAX reference mirroring the PyTorch module."""
    avg = jnp.mean(x_nchw, axis=(2, 3))              # (N, C)
    mx = jnp.max(x_nchw, axis=(2, 3))                # (N, C)

    def mlp(v):
        return jnp.maximum(v @ w1.T, 0.0) @ w2.T

    feats = jax.nn.sigmoid(mlp(avg) + mlp(mx))       # (N, C)
    return x_nchw * feats[:, :, None, None]


if __name__ == "__main__":
    # Small deterministic setup.  The module needs ch // 8 >= 1; C = 128 keeps
    # the demo representative; spatial 16x16 -> H*W = 256 (lane-dense strips).
    N, C, H, W = 2, 128, 16, 16
    Cr = C // 8

    key = jax.random.PRNGKey(0)
    kx, k1, k2 = jax.random.split(key, 3)

    x = jax.random.normal(kx, (N, C, H, W), jnp.float32)
    # PyTorch Linear weight layouts: (out_features, in_features), no bias.
    w1 = 0.1 * jax.random.normal(k1, (Cr, C), jnp.float32)   # Linear(C, C//8)
    w2 = 0.1 * jax.random.normal(k2, (C, Cr), jnp.float32)   # Linear(C//8, C)

    ref = _reference_forward(x, w1, w2)

    # Default path: one strip per image (fits budget) -> exactly 1 HBM read +
    # 1 HBM write of the activation.
    out = channel_attention_forward(x, w1, w2)
    jax.block_until_ready(out)
    assert out.shape == (N, C, H, W)
    assert jnp.allclose(out, ref, atol=1e-4, rtol=1e-4), "single-strip mismatch"

    # Force the multi-strip (large-image / v7x-VMEM) path and re-verify.
    out_strips = channel_attention_forward(x, w1, w2, max_block_bytes=64 * 1024)
    jax.block_until_ready(out_strips)
    assert jnp.allclose(out_strips, ref, atol=1e-4, rtol=1e-4), "multi-strip mismatch"

    print("KERNEL_OK")
</pallas_src>

<mosaic_0001>
module attributes {stable_mosaic.version = 11 : i64} {
  func.func @kernel(%arg0: i32, %arg1: i32, %arg2: i32, %arg3: memref<1x128x256xf32, #tpu.memory_space<vmem>>, %arg4: memref<16x128xf32, #tpu.memory_space<vmem>>, %arg5: memref<128x16xf32, #tpu.memory_space<vmem>>, %arg6: memref<1x128x256xf32, #tpu.memory_space<vmem>>, %arg7: memref<128x1xf32, #tpu.memory_space<vmem>>, %arg8: memref<128x1xf32, #tpu.memory_space<vmem>>, %arg9: memref<128x1xf32, #tpu.memory_space<vmem>>) attributes {dimension_semantics = [#tpu.dimension_semantics<parallel>, #tpu.dimension_semantics<arbitrary>, #tpu.dimension_semantics<arbitrary>], iteration_bounds = array<i64: 2, 2, 1>, scalar_prefetch = 0 : i64, scratch_operands = 3 : i64, tpu.core_type = #tpu.core_type<tc>, window_params = [{transform_indices = @transform_0, window_bounds = array<i64: 1, 128, 256>}, {pipeline_mode = #tpu.pipeline_mode<synchronous>, transform_indices = @transform_1, window_bounds = array<i64: 16, 128>}, {pipeline_mode = #tpu.pipeline_mode<synchronous>, transform_indices = @transform_2, window_bounds = array<i64: 128, 16>}, {transform_indices = @transform_3, window_bounds = array<i64: 1, 128, 256>}]} {
    %c0_i32 = arith.constant 0 : i32
    %0 = arith.cmpi eq, %arg1, %c0_i32 : i32
    %c0_i32_0 = arith.constant 0 : i32
    %1 = arith.cmpi eq, %arg2, %c0_i32_0 : i32
    %2 = arith.andi %0, %1 : i1
    %3 = arith.extui %2 : i1 to i32
    %c0_i32_1 = arith.constant 0 : i32
    %4 = arith.cmpi ne, %3, %c0_i32_1 : i32
    scf.if %4 {
      %cst = arith.constant 0.000000e+00 : f32
      %16 = vector.broadcast %cst : f32 to vector<128x1xf32>
      %c0 = arith.constant 0 : index
      %c0_8 = arith.constant 0 : index
      %17 = vector.load %arg7[%c0, %c0_8] : memref<128x1xf32, #tpu.memory_space<vmem>>, vector<128x1xf32>
      tpu.vector_store %arg7[%c0, %c0_8], %16 {strides = array<i32>} : memref<128x1xf32, #tpu.memory_space<vmem>>, vector<128x1xf32>,
      %cst_9 = arith.constant 0xFF800000 : f32
      %18 = vector.broadcast %cst_9 : f32 to vector<128x1xf32>
      %c0_10 = arith.constant 0 : index
      %c0_11 = arith.constant 0 : index
      %19 = vector.load %arg8[%c0_10, %c0_11] : memref<128x1xf32, #tpu.memory_space<vmem>>, vector<128x1xf32>
      tpu.vector_store %arg8[%c0_10, %c0_11], %18 {strides = array<i32>} : memref<128x1xf32, #tpu.memory_space<vmem>>, vector<128x1xf32>,
    } else {
    }
    %c0_i32_2 = arith.constant 0 : i32
    %5 = arith.cmpi eq, %arg1, %c0_i32_2 : i32
    %6 = arith.extui %5 : i1 to i32
    %c0_i32_3 = arith.constant 0 : i32
    %7 = arith.cmpi ne, %6, %c0_i32_3 : i32
    scf.if %7 {
      %c0 = arith.constant 0 : index
      %c0_8 = arith.constant 0 : index
      %c0_9 = arith.constant 0 : index
      %16 = vector.load %arg3[%c0, %c0_8, %c0_9] : memref<1x128x256xf32, #tpu.memory_space<vmem>>, vector<1x128x256xf32>
      %17 = vector.shape_cast %16 : vector<1x128x256xf32> to vector<128x256xf32>
      %c0_10 = arith.constant 0 : index
      %c0_11 = arith.constant 0 : index
      %18 = vector.load %arg7[%c0_10, %c0_11] : memref<128x1xf32, #tpu.memory_space<vmem>>, vector<128x1xf32>
      %cst = arith.constant dense<0.000000e+00> : vector<128xf32>
      %19 = vector.multi_reduction <add>, %17, %cst [1] : vector<128x256xf32> to vector<128xf32>
      %20 = vector.shape_cast %19 : vector<128xf32> to vector<128x1xf32>
      %21 = arith.addf %18, %20 : vector<128x1xf32>
      %c0_12 = arith.constant 0 : index
      %c0_13 = arith.constant 0 : index
      %22 = vector.load %arg7[%c0_12, %c0_13] : memref<128x1xf32, #tpu.memory_space<vmem>>, vector<128x1xf32>
      tpu.vector_store %arg7[%c0_12, %c0_13], %21 {strides = array<i32>} : memref<128x1xf32, #tpu.memory_space<vmem>>, vector<128x1xf32>,
      %c0_14 = arith.constant 0 : index
      %c0_15 = arith.constant 0 : index
      %23 = vector.load %arg8[%c0_14, %c0_15] : memref<128x1xf32, #tpu.memory_space<vmem>>, vector<128x1xf32>
      %cst_16 = arith.constant dense<0xFF800000> : vector<128xf32>
      %24 = vector.multi_reduction <maximumf>, %17, %cst_16 [1] : vector<128x256xf32> to vector<128xf32>
      %25 = vector.shape_cast %24 : vector<128xf32> to vector<128x1xf32>
      %26 = arith.maximumf %23, %25 : vector<128x1xf32>
      %c0_17 = arith.constant 0 : index
      %c0_18 = arith.constant 0 : index
      %27 = vector.load %arg8[%c0_17, %c0_18] : memref<128x1xf32, #tpu.memory_space<vmem>>, vector<128x1xf32>
      tpu.vector_store %arg8[%c0_17, %c0_18], %26 {strides = array<i32>} : memref<128x1xf32, #tpu.memory_space<vmem>>, vector<128x1xf32>,
    } else {
    }
    %c1_i32 = arith.constant 1 : i32
    %8 = arith.cmpi eq, %arg1, %c1_i32 : i32
    %c0_i32_4 = arith.constant 0 : i32
    %9 = arith.cmpi eq, %arg2, %c0_i32_4 : i32
    %10 = arith.andi %8, %9 : i1
    %11 = arith.extui %10 : i1 to i32
    %c0_i32_5 = arith.constant 0 : i32
    %12 = arith.cmpi ne, %11, %c0_i32_5 : i32
    scf.if %12 {
      %c0 = arith.constant 0 : index
      %c0_8 = arith.constant 0 : index
      %16 = vector.load %arg4[%c0, %c0_8] : memref<16x128xf32, #tpu.memory_space<vmem>>, vector<16x128xf32>
      %c0_9 = arith.constant 0 : index
      %c0_10 = arith.constant 0 : index
      %17 = vector.load %arg5[%c0_9, %c0_10] : memref<128x16xf32, #tpu.memory_space<vmem>>, vector<128x16xf32>
      %c0_11 = arith.constant 0 : index
      %c0_12 = arith.constant 0 : index
      %18 = vector.load %arg7[%c0_11, %c0_12] : memref<128x1xf32, #tpu.memory_space<vmem>>, vector<128x1xf32>
      %cst = arith.constant 3.906250e-03 : f32
      %19 = vector.broadcast %cst : f32 to vector<128x1xf32>
      %20 = arith.mulf %18, %19 : vector<128x1xf32>
      %c0_13 = arith.constant 0 : index
      %c0_14 = arith.constant 0 : index
      %21 = vector.load %arg8[%c0_13, %c0_14] : memref<128x1xf32, #tpu.memory_space<vmem>>, vector<128x1xf32>
      %cst_15 = arith.constant dense<0.000000e+00> : vector<16x1xf32>
      %22 = tpu.matmul %16, %20, %cst_15 {dimension_numbers = #tpu.dot_dimension_numbers<[1], [0], [0], [1], [0, 0, 1, 1], [], []>} : vector<16x128xf32>, vector<128x1xf32>, vector<16x1xf32> -> vector<16x1xf32>
      %cst_16 = arith.constant 0.000000e+00 : f32
      %23 = vector.broadcast %cst_16 : f32 to vector<16x1xf32>
      %24 = arith.maximumf %22, %23 : vector<16x1xf32>
      %cst_17 = arith.constant dense<0.000000e+00> : vector<16x1xf32>
      %25 = tpu.matmul %16, %21, %cst_17 {dimension_numbers = #tpu.dot_dimension_numbers<[1], [0], [0], [1], [0, 0, 1, 1], [], []>} : vector<16x128xf32>, vector<128x1xf32>, vector<16x1xf32> -> vector<16x1xf32>
      %cst_18 = arith.constant 0.000000e+00 : f32
      %26 = vector.broadcast %cst_18 : f32 to vector<16x1xf32>
      %27 = arith.maximumf %25, %26 : vector<16x1xf32>
      %28 = arith.addf %24, %27 : vector<16x1xf32>
      %cst_19 = arith.constant dense<0.000000e+00> : vector<128x1xf32>
      %29 = tpu.matmul %17, %28, %cst_19 {dimension_numbers = #tpu.dot_dimension_numbers<[1], [0], [0], [1], [0, 0, 1, 1], [], []>} : vector<128x16xf32>, vector<16x1xf32>, vector<128x1xf32> -> vector<128x1xf32>
      %cst_20 = arith.constant 0.000000e+00 : f32
      %30 = vector.broadcast %cst_20 : f32 to vector<128x1xf32>
      %31 = arith.subf %30, %29 : vector<128x1xf32>
      %32 = math.exp %31 : vector<128x1xf32>
      %cst_21 = arith.constant 1.000000e+00 : f32
      %33 = vector.broadcast %cst_21 : f32 to vector<128x1xf32>
      %34 = arith.addf %33, %32 : vector<128x1xf32>
      %cst_22 = arith.constant 1.000000e+00 : f32
      %35 = vector.broadcast %cst_22 : f32 to vector<128x1xf32>
      %36 = arith.divf %35, %34 : vector<128x1xf32>
      %c0_23 = arith.constant 0 : index
      %c0_24 = arith.constant 0 : index
      %37 = vector.load %arg9[%c0_23, %c0_24] : memref<128x1xf32, #tpu.memory_space<vmem>>, vector<128x1xf32>
      tpu.vector_store %arg9[%c0_23, %c0_24], %36 {strides = array<i32>} : memref<128x1xf32, #tpu.memory_space<vmem>>, vector<128x1xf32>,
    } else {
    }
    %c1_i32_6 = arith.constant 1 : i32
    %13 = arith.cmpi eq, %arg1, %c1_i32_6 : i32
    %14 = arith.extui %13 : i1 to i32
    %c0_i32_7 = arith.constant 0 : i32
    %15 = arith.cmpi ne, %14, %c0_i32_7 : i32
    scf.if %15 {
      %c0 = arith.constant 0 : index
      %c0_8 = arith.constant 0 : index
      %c0_9 = arith.constant 0 : index
      %16 = vector.load %arg3[%c0, %c0_8, %c0_9] : memref<1x128x256xf32, #tpu.memory_space<vmem>>, vector<1x128x256xf32>
      %17 = vector.shape_cast %16 : vector<1x128x256xf32> to vector<128x256xf32>
      %c0_10 = arith.constant 0 : index
      %c0_11 = arith.constant 0 : index
      %18 = vector.load %arg9[%c0_10, %c0_11] : memref<128x1xf32, #tpu.memory_space<vmem>>, vector<128x1xf32>
      %19 = vector.broadcast %18 : vector<128x1xf32> to vector<128x256xf32>
      %20 = arith.mulf %17, %19 : vector<128x256xf32>
      %c0_12 = arith.constant 0 : index
      %c0_13 = arith.constant 0 : index
      %c0_14 = arith.constant 0 : index
      %21 = vector.load %arg6[%c0_12, %c0_13, %c0_14] : memref<1x128x256xf32, #tpu.memory_space<vmem>>, vector<1x128x256xf32>
      %22 = vector.shape_cast %21 : vector<1x128x256xf32> to vector<128x256xf32>
      %23 = vector.shape_cast %20 : vector<128x256xf32> to vector<1x128x256xf32>
      tpu.vector_store %arg6[%c0_12, %c0_13, %c0_14], %23 {strides = array<i32>} : memref<1x128x256xf32, #tpu.memory_space<vmem>>, vector<1x128x256xf32>,
    } else {
    }
    return
  }
  func.func @transform_0(%arg0: i32, %arg1: i32, %arg2: i32) -> (i32, i32, i32) {
    %c0_i32 = arith.constant 0 : i32
    %c0_i32_0 = arith.constant 0 : i32
    return %arg0, %c0_i32, %arg2 : i32, i32, i32
  }
  func.func @transform_1(%arg0: i32, %arg1: i32, %arg2: i32) -> (i32, i32) {
    %c0_i32 = arith.constant 0 : i32
    %c0_i32_0 = arith.constant 0 : i32
    %c0_i32_1 = arith.constant 0 : i32
    return %c0_i32, %c0_i32_0 : i32, i32
  }
  func.func @transform_2(%arg0: i32, %arg1: i32, %arg2: i32) -> (i32, i32) {
    %c0_i32 = arith.constant 0 : i32
    %c0_i32_0 = arith.constant 0 : i32
    %c0_i32_1 = arith.constant 0 : i32
    return %c0_i32, %c0_i32_0 : i32, i32
  }
  func.func @transform_3(%arg0: i32, %arg1: i32, %arg2: i32) -> (i32, i32, i32) {
    %0 = arith.muli %arg2, %arg1 : i32
    %c0_i32 = arith.constant 0 : i32
    %c0_i32_0 = arith.constant 0 : i32
    return %arg0, %c0_i32, %0 : i32, i32, i32
  }
}

</mosaic_0001>

<llo_original>
// kernel: channel_attention_forward.1
$region0: #{channel_attention_forward.1}
  #allocation0 [shape = 'u32[]', space=smem, size = 0x4, offset = 0x4, fixed_abs, tag = 'smem constant byte address 0x4 - core index']
  #allocation1 [shape = 'u32[72,128]{1,0:T(1,128)}', space=vmem, size = 0x9000, scoped, tag = 'internal scratch']
  #allocation2 [shape = 'f32[128,1]{1,0:T(8,128)}', space=vmem, size = 0x10000, scoped, tag = 'scratch operand']
  #allocation3 [shape = 'f32[128,1]{1,0:T(8,128)}', space=vmem, size = 0x10000, scoped, tag = 'scratch operand']
  #allocation4 [shape = 'f32[128,1]{1,0:T(8,128)}', space=vmem, size = 0x10000, scoped, tag = 'scratch operand']
  %s0 = inlined_call_operand.vmem [shape: f32[2,128,256], index: 0, kind: input, shape index: {}]
  %s1 = inlined_call_operand.vmem [shape: f32[16,128], index: 1, kind: input, shape index: {}]
  %s2 = inlined_call_operand.vmem [shape: f32[128,16], index: 2, kind: input, shape index: {}]
  %s3 = inlined_call_operand.vmem [shape: f32[2,128,256], index: 3, kind: output, shape index: {}]
  %s4 = sld [smem:[#allocation0]]
  $region61: #{channel_attention_forward.1} parent=0
    _
  %s6 = ssub.s32 1, %s4
  %s7 = scalar_select 0, %s6, %s4
  loop: start=0, step=1, limit=6
  $region2: #{channel_attention_forward.1} parent=0 // loop_pre_header
    _
  $region3: #{channel_attention_forward.1} parent=0 // loop_header
    %s9 = sphi 0, %s13
    %p10 = scmp.ge.s32.totalorder %s9, 6
    %s16 = sphi 0, %s35
    %s17 = sphi 0, %s31
    %s18 = sphi 0, %s27
    %s19 = sphi 0, %s16
    %s20 = sphi 0, %s17
    %s21 = sphi 0, %s18
    %s22 = sphi 0, %s19
    %s23 = sphi 0, %s20
    %s24 = sphi 0, %s21
    %s40 = sphi 0, %s42
    %s43 = sphi 0, %s40
    %s44 = sphi 0, %s43
    %s60 = sphi 0, %s44
    %s64 = sphi 0, %s64
    %s66 = sphi 0, %s64
    %s67 = sphi 0, %s66
    %s81 = sphi 0, %s67
    %s85 = sphi 0, %s85
    %s87 = sphi 0, %s85
    %s88 = sphi 0, %s87
    %s102 = sphi 0, %s88
    %s112 = sphi 0, %s114
    %s115 = sphi 0, %s112
    %s116 = sphi 0, %s115
    %s132 = sphi 0, %s116
  $region4: #{channel_attention_forward.1} parent=0 // loop_header_branch
    %12 = sbr.rel (%p10) target = $region8
  $region5: #{channel_attention_forward.1} parent=0 // loop_body
    %s14 = ssub.s32 %s9, 1
    %s15 = ssub.s32 %s9, 2
    %s25 = sadd.s32 1, %s18
    %p26 = scmp.ge.s32.totalorder %s25, 1
    %s27 = scalar_select %p26, 0, %s25
    %s28 = sadd.s32 1, %s17
    %s29 = scalar_select %p26, %s28, %s17
    %p30 = scmp.ge.s32.totalorder %s29, 2
    %s31 = scalar_select %p30, 0, %s29
    %s32 = sadd.s32 1, %s16
    %s33 = scalar_select %p30, %s32, %s16
    %p34 = scmp.ge.s32.totalorder %s33, 2
    %s35 = scalar_select %p34, 0, %s33
    %s36 = ssub.s32 %s16, %s35
    %s37 = ssub.s32 %s18, %s27
    %s38 = sor.u32 %s36, %s37
    %p39 = scmp.eq.s32.totalorder %s38, 0
    %s41 = sadd.s32 %s40, 1
    %s42 = scalar_select %p39, %s40, %s41
    %p45 = pneg %p39
    %p46 = scmp.eq.s32.totalorder %s9, 3
    %p47 = por %p45, %p46
    %p48 = scmp.ne.s32.totalorder %s40, %s43
    %p49 = scmp.eq.s32.totalorder %s9, 0
    %p50 = por %p48, %p49
    %p51 = scmp.ne.s32.totalorder %s40, %s43
    %p52 = scmp.eq.s32.totalorder %s14, 3
    %p53 = por %p51, %p52
    %p54 = scmp.ne.s32.totalorder %s43, %s44
    %p55 = scmp.eq.s32.totalorder %s14, 0
    %p56 = por %p54, %p55
    %p57 = scmp.ne.s32.totalorder %s43, %s44
    %p58 = scmp.eq.s32.totalorder %s15, 3
    %p59 = por %p57, %p58
    %p61 = scmp.ne.s32.totalorder %s44, %s60
    %p62 = scmp.eq.s32.totalorder %s15, 0
    %p63 = por %p61, %p62
    %s65 = sadd.s32 %s64, 1
    %p68 = scmp.eq.s32.totalorder %s9, 3
    %p69 = scmp.ne.s32.totalorder %s64, %s66
    %p70 = scmp.eq.s32.totalorder %s9, 0
    %p71 = por %p69, %p70
    %p72 = scmp.ne.s32.totalorder %s64, %s66
    %p73 = scmp.eq.s32.totalorder %s14, 3
    %p74 = por %p72, %p73
    %p75 = scmp.ne.s32.totalorder %s66, %s67
    %p76 = scmp.eq.s32.totalorder %s14, 0
    %p77 = por %p75, %p76
    %p78 = scmp.ne.s32.totalorder %s66, %s67
    %p79 = scmp.eq.s32.totalorder %s15, 3
    %p80 = por %p78, %p79
    %p82 = scmp.ne.s32.totalorder %s67, %s81
    %p83 = scmp.eq.s32.totalorder %s15, 0
    %p84 = por %p82, %p83
    %s86 = sadd.s32 %s85, 1
    %p89 = scmp.eq.s32.totalorder %s9, 3
    %p90 = scmp.ne.s32.totalorder %s85, %s87
    %p91 = scmp.eq.s32.totalorder %s9, 0
    %p92 = por %p90, %p91
    %p93 = scmp.ne.s32.totalorder %s85, %s87
    %p94 = scmp.eq.s32.totalorder %s14, 3
    %p95 = por %p93, %p94
    %p96 = scmp.ne.s32.totalorder %s87, %s88
    %p97 = scmp.eq.s32.totalorder %s14, 0
    %p98 = por %p96, %p97
    %p99 = scmp.ne.s32.totalorder %s87, %s88
    %p100 = scmp.eq.s32.totalorder %s15, 3
    %p101 = por %p99, %p100
    %p103 = scmp.ne.s32.totalorder %s88, %s102
    %p104 = scmp.eq.s32.totalorder %s15, 0
    %p105 = por %p103, %p104
    %s106 = smul.u32 %s18, %s17
    %s107 = smul.u32 %s27, %s31
    %s108 = ssub.s32 %s16, %s35
    %s109 = ssub.s32 %s106, %s107
    %s110 = sor.u32 %s108, %s109
    %p111 = scmp.eq.s32.totalorder %s110, 0
    %s113 = sadd.s32 %s112, 1
    %s114 = scalar_select %p111, %s112, %s113
    %p117 = pneg %p111
    %p118 = scmp.eq.s32.totalorder %s9, 3
    %p119 = por %p117, %p118
    %p120 = scmp.ne.s32.totalorder %s112, %s115
    %p121 = scmp.eq.s32.totalorder %s9, 0
    %p122 = por %p120, %p121
    %p123 = scmp.ne.s32.totalorder %s112, %s115
    %p124 = scmp.eq.s32.totalorder %s14, 3
    %p125 = por %p123, %p124
    %p126 = scmp.ne.s32.totalorder %s115, %s116
    %p127 = scmp.eq.s32.totalorder %s14, 0
    %p128 = por %p126, %p127
    %p129 = scmp.ne.s32.totalorder %s115, %s116
    %p130 = scmp.eq.s32.totalorder %s15, 3
    %p131 = por %p129, %p130
    %p133 = scmp.ne.s32.totalorder %s116, %s132
    %p134 = scmp.eq.s32.totalorder %s15, 0
    %p135 = por %p133, %p134
    %p136 = scmp.le.s32.totalorder 1, %s9
    %p137 = scmp.lt.s32.totalorder %s9, 5
    %p138 = pnand %p136, %p137
    %p139 = pneg %p138
    // Predicated region
    $region9: #{channel_attention_forward.1} parent=5 // pred_check
      _
    $region10: #{channel_attention_forward.1} parent=5 // pred_check_branch
      %141 = sbr.rel (%p138) target = $region12
    $region11: #{channel_attention_forward.1} parent=5 // pred_region
      %s142 = ssub.s32 %s9, 1
      // Predicated region
      $region13: #{channel_attention_forward.1} parent=11 // pred_check
        %p143 = pneg %p77
      $region14: #{channel_attention_forward.1} parent=11 // pred_check_branch
        %145 = sbr.rel (%p143) target = $region16
      $region15: #{channel_attention_forward.1} parent=11 // pred_region
        _
      $region16: #{channel_attention_forward.1} parent=11 // pred_fallthru
        _
      // Predicated region
      $region17: #{channel_attention_forward.1} parent=11 // pred_check
        %p146 = pneg %p98
      $region18: #{channel_attention_forward.1} parent=11 // pred_check_branch
        %148 = sbr.rel (%p146) target = $region20
      $region19: #{channel_attention_forward.1} parent=11 // pred_region
        _
      $region20: #{channel_attention_forward.1} parent=11 // pred_fallthru
        _
    $region12: #{channel_attention_forward.1} parent=5 // pred_fallthru
      _
    %p149 = scmp.lt.s32.totalorder %s9, 4
    // Predicated region
    $region21: #{channel_attention_forward.1} parent=5 // pred_check
      %p150 = pneg %p149
    $region22: #{channel_attention_forward.1} parent=5 // pred_check_branch
      %152 = sbr.rel (%p150) target = $region24
    $region23: #{channel_attention_forward.1} parent=5 // pred_region
      // Predicated region
      $region25: #{channel_attention_forward.1} parent=23 // pred_check
        %p153 = pneg %p50
      $region26: #{channel_attention_forward.1} parent=23 // pred_check_branch
        %155 = sbr.rel (%p153) target = $region28
      $region27: #{channel_attention_forward.1} parent=23 // pred_region
        %s156 = smul.u32 2, %s18
        %p157 = scmp.lt.s32.totalorder %s16, 1
        %s158 = scalar_select %p157, %s16, 1
        %p159 = scmp.lt.s32.totalorder %s156, 1
        %s160 = scalar_select %p159, %s156, 1
        %s161 = smul.addr %s158, 32
        %s162 = sadd.s32 %s160, %s161
        %s163 = smul.addr %s162, 8
        %s164 = scalar_lea.vmem %s0, %s163
        %s165 = smul.u32 2, %s18
      $region28: #{channel_attention_forward.1} parent=23 // pred_fallthru
        _
    $region24: #{channel_attention_forward.1} parent=5 // pred_fallthru
      _
    %p166 = scmp.le.s32.totalorder 1, %s9
    %p167 = scmp.lt.s32.totalorder %s9, 5
    %p168 = pnand %p166, %p167
    %p169 = pneg %p168
    // Predicated region
    $region29: #{channel_attention_forward.1} parent=5 // pred_check
      _
    $region30: #{channel_attention_forward.1} parent=5 // pred_check_branch
      %171 = sbr.rel (%p168) target = $region32
    $region31: #{channel_attention_forward.1} parent=5 // pred_region
      %s172 = ssub.s32 %s9, 1
      %s173 = smul.u32 2, %s21
      %p174 = scmp.lt.s32.totalorder %s19, 1
      %s175 = scalar_select %p174, %s19, 1
      %p176 = scmp.lt.s32.totalorder %s173, 1
      %s177 = scalar_select %p176, %s173, 1
      %s178 = smul.addr %s175, 32
      %s179 = sadd.s32 %s177, %s178
      %s180 = smul.addr %s179, 8
      %s181 = scalar_lea.vmem %s0, %s180
      %p182 = pneg %p56
      %p183 = pneg %p53
      %p184 = pneg %p77
      %p185 = pneg %p74
      %p186 = pneg %p98
      %p187 = pneg %p95
      %p188 = pneg %p128
      %p189 = pneg %p125
      %s190 = smul.u32 %s21, %s20
      %s191 = smul.u32 2, %s190
      %p192 = scmp.lt.s32.totalorder %s19, 1
      %s193 = scalar_select %p192, %s19, 1
      %p194 = scmp.lt.s32.totalorder %s191, 1
      %s195 = scalar_select %p194, %s191, 1
      %s196 = smul.addr %s193, 32
      %s197 = sadd.s32 %s195, %s196
      %s198 = smul.addr %s197, 8
      %s199 = scalar_lea.vmem %s3, %s198
      %s200 = smul.u32 2, %s21
      %p201 = scmp.lt.s32.totalorder %s19, 1
      %s202 = scalar_select %p201, %s19, 1
      %p203 = scmp.lt.s32.totalorder %s200, 1
      %s204 = scalar_select %p203, %s200, 1
      %s205 = smul.addr %s202, 32
      %s206 = sadd.s32 %s204, %s205
      %s207 = smul.addr %s206, 8
      %s208 = scalar_lea.vmem %s0, %s207
      %s209 = smul.u32 2, %s21
      %s210 = smul.u32 %s21, %s20
      %s211 = smul.u32 2, %s210
      %p212 = scmp.lt.s32.totalorder %s19, 1
      %s213 = scalar_select %p212, %s19, 1
      %p214 = scmp.lt.s32.totalorder %s211, 1
      %s215 = scalar_select %p214, %s211, 1
      %s216 = smul.addr %s213, 32
      %s217 = sadd.s32 %s215, %s216
      %s218 = smul.addr %s217, 8
      %s219 = scalar_lea.vmem %s3, %s218
      %s220 = smul.u32 %s21, %s20
      %s221 = smul.u32 2, %s220
      %p222 = scmp.eq.s32.totalorder %s20, 0
      %p223 = scmp.eq.s32.totalorder %s21, 0
      %p224 = pnand %p222, %p223
      %p225 = pneg %p224
      // Predicated region
      $region33: #{channel_attention_forward.1} parent=31 // pred_check
        _
      $region34: #{channel_attention_forward.1} parent=31 // pred_check_branch
        %227 = sbr.rel (%p224) target = $region36
      $region35: #{channel_attention_forward.1} parent=31 // pred_region
        %vm228 = vcmask 7168
        %229 = vst.msk [vmem:[#allocation2] sm:$0xff] %vm228, 0.0
        %230 = vst.msk [vmem:[#allocation2 + $0x8] sm:$0xff] %vm228, 0.0
        %231 = vst.msk [vmem:[#allocation2 + $0x10] sm:$0xff] %vm228, 0.0
        %232 = vst.msk [vmem:[#allocation2 + $0x18] sm:$0xff] %vm228, 0.0
        %233 = vst.msk [vmem:[#allocation2 + $0x20] sm:$0xff] %vm228, 0.0
        %234 = vst.msk [vmem:[#allocation2 + $0x28] sm:$0xff] %vm228, 0.0
        %235 = vst.msk [vmem:[#allocation2 + $0x30] sm:$0xff] %vm228, 0.0
        %236 = vst.msk [vmem:[#allocation2 + $0x38] sm:$0xff] %vm228, 0.0
        %237 = vst.msk [vmem:[#allocation2 + $0x40] sm:$0xff] %vm228, 0.0
        %238 = vst.msk [vmem:[#allocation2 + $0x48] sm:$0xff] %vm228, 0.0
        %239 = vst.msk [vmem:[#allocation2 + $0x50] sm:$0xff] %vm228, 0.0
        %240 = vst.msk [vmem:[#allocation2 + $0x58] sm:$0xff] %vm228, 0.0
        %241 = vst.msk [vmem:[#allocation2 + $0x60] sm:$0xff] %vm228, 0.0
        %242 = vst.msk [vmem:[#allocation2 + $0x68] sm:$0xff] %vm228, 0.0
        %243 = vst.msk [vmem:[#allocation2 + $0x70] sm:$0xff] %vm228, 0.0
        %244 = vst.msk [vmem:[#allocation2 + $0x78] sm:$0xff] %vm228, 0.0
        %245 = vst.msk [vmem:[#allocation3] sm:$0xff] %vm228, -inf
        %246 = vst.msk [vmem:[#allocation3 + $0x8] sm:$0xff] %vm228, -inf
        %247 = vst.msk [vmem:[#allocation3 + $0x10] sm:$0xff] %vm228, -inf
        %248 = vst.msk [vmem:[#allocation3 + $0x18] sm:$0xff] %vm228, -inf
        %249 = vst.msk [vmem:[#allocation3 + $0x20] sm:$0xff] %vm228, -inf
        %250 = vst.msk [vmem:[#allocation3 + $0x28] sm:$0xff] %vm228, -inf
        %251 = vst.msk [vmem:[#allocation3 + $0x30] sm:$0xff] %vm228, -inf
        %252 = vst.msk [vmem:[#allocation3 + $0x38] sm:$0xff] %vm228, -inf
        %253 = vst.msk [vmem:[#allocation3 + $0x40] sm:$0xff] %vm228, -inf
        %254 = vst.msk [vmem:[#allocation3 + $0x48] sm:$0xff] %vm228, -inf
        %255 = vst.msk [vmem:[#allocation3 + $0x50] sm:$0xff] %vm228, -inf
        %256 = vst.msk [vmem:[#allocation3 + $0x58] sm:$0xff] %vm228, -inf
        %257 = vst.msk [vmem:[#allocation3 + $0x60] sm:$0xff] %vm228, -inf
        %258 = vst.msk [vmem:[#allocation3 + $0x68] sm:$0xff] %vm228, -inf
        %259 = vst.msk [vmem:[#allocation3 + $0x70] sm:$0xff] %vm228, -inf
        %260 = vst.msk [vmem:[#allocation3 + $0x78] sm:$0xff] %vm228, -inf
      $region36: #{channel_attention_forward.1} parent=31 // pred_fallthru
        _
      // Predicated region
      $region37: #{channel_attention_forward.1} parent=31 // pred_check
        %p261 = pneg %p222
      $region38: #{channel_attention_forward.1} parent=31 // pred_check_branch
        %263 = sbr.rel (%p261) target = $region40
      $region39: #{channel_attention_forward.1} parent=31 // pred_region
        %v264 = vld [vmem:[%s208] sm:$0xff]
        %v265 = vld [vmem:[%s208 + $0x8] sm:$0xff]
        %v266 = vld [vmem:[%s208 + $0x10] sm:$0xff]
        %v267 = vld [vmem:[%s208 + $0x18] sm:$0xff]
        %v268 = vld [vmem:[%s208 + $0x20] sm:$0xff]
        %v269 = vld [vmem:[%s208 + $0x28] sm:$0xff]
        %v270 = vld [vmem:[%s208 + $0x30] sm:$0xff]
        %v271 = vld [vmem:[%s208 + $0x38] sm:$0xff]
        %v272 = vld [vmem:[%s208 + $0x40] sm:$0xff]
        %v273 = vld [vmem:[%s208 + $0x48] sm:$0xff]
        %v274 = vld [vmem:[%s208 + $0x50] sm:$0xff]
        %v275 = vld [vmem:[%s208 + $0x58] sm:$0xff]
        %v276 = vld [vmem:[%s208 + $0x60] sm:$0xff]
        %v277 = vld [vmem:[%s208 + $0x68] sm:$0xff]
        %v278 = vld [vmem:[%s208 + $0x70] sm:$0xff]
        %v279 = vld [vmem:[%s208 + $0x78] sm:$0xff]
        %v280 = vld [vmem:[%s208 + $0x80] sm:$0xff]
        %v281 = vld [vmem:[%s208 + $0x88] sm:$0xff]
        %v282 = vld [vmem:[%s208 + $0x90] sm:$0xff]
        %v283 = vld [vmem:[%s208 + $0x98] sm:$0xff]
        %v284 = vld [vmem:[%s208 + $0xa0] sm:$0xff]
        %v285 = vld [vmem:[%s208 + $0xa8] sm:$0xff]
        %v286 = vld [vmem:[%s208 + $0xb0] sm:$0xff]
        %v287 = vld [vmem:[%s208 + $0xb8] sm:$0xff]
        %v288 = vld [vmem:[%s208 + $0xc0] sm:$0xff]
        %v289 = vld [vmem:[%s208 + $0xc8] sm:$0xff]
        %v290 = vld [vmem:[%s208 + $0xd0] sm:$0xff]
        %v291 = vld [vmem:[%s208 + $0xd8] sm:$0xff]
        %v292 = vld [vmem:[%s208 + $0xe0] sm:$0xff]
        %v293 = vld [vmem:[%s208 + $0xe8] sm:$0xff]
        %v294 = vld [vmem:[%s208 + $0xf0] sm:$0xff]
        %v295 = vld [vmem:[%s208 + $0xf8] sm:$0xff]
        %v296 = vld [vmem:[#allocation2] sm:$0xff]
        %v297 = vld [vmem:[#allocation2 + $0x8] sm:$0xff]
        %v298 = vld [vmem:[#allocation2 + $0x10] sm:$0xff]
        %v299 = vld [vmem:[#allocation2 + $0x18] sm:$0xff]
        %v300 = vld [vmem:[#allocation2 + $0x20] sm:$0xff]
        %v301 = vld [vmem:[#allocation2 + $0x28] sm:$0xff]
        %v302 = vld [vmem:[#allocation2 + $0x30] sm:$0xff]
        %v303 = vld [vmem:[#allocation2 + $0x38] sm:$0xff]
        %v304 = vld [vmem:[#allocation2 + $0x40] sm:$0xff]
        %v305 = vld [vmem:[#allocation2 + $0x48] sm:$0xff]
        %v306 = vld [vmem:[#allocation2 + $0x50] sm:$0xff]
        %v307 = vld [vmem:[#allocation2 + $0x58] sm:$0xff]
        %v308 = vld [vmem:[#allocation2 + $0x60] sm:$0xff]
        %v309 = vld [vmem:[#allocation2 + $0x68] sm:$0xff]
        %v310 = vld [vmem:[#allocation2 + $0x70] sm:$0xff]
        %v311 = vld [vmem:[#allocation2 + $0x78] sm:$0xff]
        %v312 = vadd.f32 %v264, %v265
        %313 = vadd.xlane.f32.xlu0 %v312
        %v314 = vpop.xlane.xlu0 %313
        %v315 = vadd.f32 %v266, %v267
        %316 = vadd.xlane.f32.xlu0 %v315
        %v317 = vpop.xlane.xlu0 %316
        %v318 = vadd.f32 %v268, %v269
        %319 = vadd.xlane.f32.xlu0 %v318
        %v320 = vpop.xlane.xlu0 %319
        %v321 = vadd.f32 %v270, %v271
        %322 = vadd.xlane.f32.xlu0 %v321
        %v323 = vpop.xlane.xlu0 %322
        %v324 = vadd.f32 %v272, %v273
        %325 = vadd.xlane.f32.xlu0 %v324
        %v326 = vpop.xlane.xlu0 %325
        %v327 = vadd.f32 %v274, %v275
        %328 = vadd.xlane.f32.xlu0 %v327
        %v329 = vpop.xlane.xlu0 %328
        %v330 = vadd.f32 %v276, %v277
        %331 = vadd.xlane.f32.xlu0 %v330
        %v332 = vpop.xlane.xlu0 %331
        %v333 = vadd.f32 %v278, %v279
        %334 = vadd.xlane.f32.xlu0 %v333
        %v335 = vpop.xlane.xlu0 %334
        %v336 = vadd.f32 %v280, %v281
        %337 = vadd.xlane.f32.xlu0 %v336
        %v338 = vpop.xlane.xlu0 %337
        %v339 = vadd.f32 %v282, %v283
        %340 = vadd.xlane.f32.xlu0 %v339
        %v341 = vpop.xlane.xlu0 %340
        %v342 = vadd.f32 %v284, %v285
        %343 = vadd.xlane.f32.xlu0 %v342
        %v344 = vpop.xlane.xlu0 %343
        %v345 = vadd.f32 %v286, %v287
        %346 = vadd.xlane.f32.xlu0 %v345
        %v347 = vpop.xlane.xlu0 %346
        %v348 = vadd.f32 %v288, %v289
        %349 = vadd.xlane.f32.xlu0 %v348
        %v350 = vpop.xlane.xlu0 %349
        %v351 = vadd.f32 %v290, %v291
        %352 = vadd.xlane.f32.xlu0 %v351
        %v353 = vpop.xlane.xlu0 %352
        %v354 = vadd.f32 %v292, %v293
        %355 = vadd.xlane.f32.xlu0 %v354
        %v356 = vpop.xlane.xlu0 %355
        %v357 = vadd.f32 %v294, %v295
        %358 = vadd.xlane.f32.xlu0 %v357
        %v359 = vpop.xlane.xlu0 %358
        %v360 = vadd.f32 %v296, %v314
        %v361 = vadd.f32 %v297, %v317
        %v362 = vadd.f32 %v298, %v320
        %v363 = vadd.f32 %v299, %v323
        %v364 = vadd.f32 %v300, %v326
        %v365 = vadd.f32 %v301, %v329
        %v366 = vadd.f32 %v302, %v332
        %v367 = vadd.f32 %v303, %v335
        %v368 = vadd.f32 %v304, %v338
        %v369 = vadd.f32 %v305, %v341
        %v370 = vadd.f32 %v306, %v344
        %v371 = vadd.f32 %v307, %v347
        %v372 = vadd.f32 %v308, %v350
        %v373 = vadd.f32 %v309, %v353
        %v374 = vadd.f32 %v310, %v356
        %v375 = vadd.f32 %v311, %v359
        %vm376 = vcmask 7168
        %377 = vst.msk [vmem:[#allocation2] sm:$0xff] %vm376, %v360
        %378 = vst.msk [vmem:[#allocation2 + $0x8] sm:$0xff] %vm376, %v361
        %379 = vst.msk [vmem:[#allocation2 + $0x10] sm:$0xff] %vm376, %v362
        %380 = vst.msk [vmem:[#allocation2 + $0x18] sm:$0xff] %vm376, %v363
        %381 = vst.msk [vmem:[#allocation2 + $0x20] sm:$0xff] %vm376, %v364
        %382 = vst.msk [vmem:[#allocation2 + $0x28] sm:$0xff] %vm376, %v365
        %383 = vst.msk [vmem:[#allocation2 + $0x30] sm:$0xff] %vm376, %v366
        %384 = vst.msk [vmem:[#allocation2 + $0x38] sm:$0xff] %vm376, %v367
        %385 = vst.msk [vmem:[#allocation2 + $0x40] sm:$0xff] %vm376, %v368
        %386 = vst.msk [vmem:[#allocation2 + $0x48] sm:$0xff] %vm376, %v369
        %387 = vst.msk [vmem:[#allocation2 + $0x50] sm:$0xff] %vm376, %v370
        %388 = vst.msk [vmem:[#allocation2 + $0x58] sm:$0xff] %vm376, %v371
        %389 = vst.msk [vmem:[#allocation2 + $0x60] sm:$0xff] %vm376, %v372
        %390 = vst.msk [vmem:[#allocation2 + $0x68] sm:$0xff] %vm376, %v373
        %391 = vst.msk [vmem:[#allocation2 + $0x70] sm:$0xff] %vm376, %v374
        %392 = vst.msk [vmem:[#allocation2 + $0x78] sm:$0xff] %vm376, %v375
        %v393 = vld [vmem:[#allocation3] sm:$0xff]
        %v394 = vld [vmem:[#allocation3 + $0x8] sm:$0xff]
        %v395 = vld [vmem:[#allocation3 + $0x10] sm:$0xff]
        %v396 = vld [vmem:[#allocation3 + $0x18] sm:$0xff]
        %v397 = vld [vmem:[#allocation3 + $0x20] sm:$0xff]
        %v398 = vld [vmem:[#allocation3 + $0x28] sm:$0xff]
        %v399 = vld [vmem:[#allocation3 + $0x30] sm:$0xff]
        %v400 = vld [vmem:[#allocation3 + $0x38] sm:$0xff]
        %v401 = vld [vmem:[#allocation3 + $0x40] sm:$0xff]
        %v402 = vld [vmem:[#allocation3 + $0x48] sm:$0xff]
        %v403 = vld [vmem:[#allocation3 + $0x50] sm:$0xff]
        %v404 = vld [vmem:[#allocation3 + $0x58] sm:$0xff]
        %v405 = vld [vmem:[#allocation3 + $0x60] sm:$0xff]
        %v406 = vld [vmem:[#allocation3 + $0x68] sm:$0xff]
        %v407 = vld [vmem:[#allocation3 + $0x70] sm:$0xff]
        %v408 = vld [vmem:[#allocation3 + $0x78] sm:$0xff]
        %v409 = vmax.f32 %v264, %v265
        %410 = vmax.xlane.f32.xlu0 %v409
        %v411 = vpop.xlane.xlu0 %410
        %v412 = vmax.f32 %v266, %v267
        %413 = vmax.xlane.f32.xlu0 %v412
        %v414 = vpop.xlane.xlu0 %413
        %v415 = vmax.f32 %v268, %v269
        %416 = vmax.xlane.f32.xlu0 %v415
        %v417 = vpop.xlane.xlu0 %416
        %v418 = vmax.f32 %v270, %v271
        %419 = vmax.xlane.f32.xlu0 %v418
        %v420 = vpop.xlane.xlu0 %419
        %v421 = vmax.f32 %v272, %v273
        %422 = vmax.xlane.f32.xlu0 %v421
        %v423 = vpop.xlane.xlu0 %422
        %v424 = vmax.f32 %v274, %v275
        %425 = vmax.xlane.f32.xlu0 %v424
        %v426 = vpop.xlane.xlu0 %425
        %v427 = vmax.f32 %v276, %v277
        %428 = vmax.xlane.f32.xlu0 %v427
        %v429 = vpop.xlane.xlu0 %428
        %v430 = vmax.f32 %v278, %v279
        %431 = vmax.xlane.f32.xlu0 %v430
        %v432 = vpop.xlane.xlu0 %431
        %v433 = vmax.f32 %v280, %v281
        %434 = vmax.xlane.f32.xlu0 %v433
        %v435 = vpop.xlane.xlu0 %434
        %v436 = vmax.f32 %v282, %v283
        %437 = vmax.xlane.f32.xlu0 %v436
        %v438 = vpop.xlane.xlu0 %437
        %v439 = vmax.f32 %v284, %v285
        %440 = vmax.xlane.f32.xlu0 %v439
        %v441 = vpop.xlane.xlu0 %440
        %v442 = vmax.f32 %v286, %v287
        %443 = vmax.xlane.f32.xlu0 %v442
        %v444 = vpop.xlane.xlu0 %443
        %v445 = vmax.f32 %v288, %v289
        %446 = vmax.xlane.f32.xlu0 %v445
        %v447 = vpop.xlane.xlu0 %446
        %v448 = vmax.f32 %v290, %v291
        %449 = vmax.xlane.f32.xlu0 %v448
        %v450 = vpop.xlane.xlu0 %449
        %v451 = vmax.f32 %v292, %v293
        %452 = vmax.xlane.f32.xlu0 %v451
        %v453 = vpop.xlane.xlu0 %452
        %v454 = vmax.f32 %v294, %v295
        %455 = vmax.xlane.f32.xlu0 %v454
        %v456 = vpop.xlane.xlu0 %455
        %v457 = vmax.f32 %v393, %v411
        %v458 = vmax.f32 %v394, %v414
        %v459 = vmax.f32 %v395, %v417
        %v460 = vmax.f32 %v396, %v420
        %v461 = vmax.f32 %v397, %v423
        %v462 = vmax.f32 %v398, %v426
        %v463 = vmax.f32 %v399, %v429
        %v464 = vmax.f32 %v400, %v432
        %v465 = vmax.f32 %v401, %v435
        %v466 = vmax.f32 %v402, %v438
        %v467 = vmax.f32 %v403, %v441
        %v468 = vmax.f32 %v404, %v444
        %v469 = vmax.f32 %v405, %v447
        %v470 = vmax.f32 %v406, %v450
        %v471 = vmax.f32 %v407, %v453
        %v472 = vmax.f32 %v408, %v456
        %473 = vst.msk [vmem:[#allocation3] sm:$0xff] %vm376, %v457
        %474 = vst.msk [vmem:[#allocation3 + $0x8] sm:$0xff] %vm376, %v458
        %475 = vst.msk [vmem:[#allocation3 + $0x10] sm:$0xff] %vm376, %v459
        %476 = vst.msk [vmem:[#allocation3 + $0x18] sm:$0xff] %vm376, %v460
        %477 = vst.msk [vmem:[#allocation3 + $0x20] sm:$0xff] %vm376, %v461
        %478 = vst.msk [vmem:[#allocation3 + $0x28] sm:$0xff] %vm376, %v462
        %479 = vst.msk [vmem:[#allocation3 + $0x30] sm:$0xff] %vm376, %v463
        %480 = vst.msk [vmem:[#allocation3 + $0x38] sm:$0xff] %vm376, %v464
        %481 = vst.msk [vmem:[#allocation3 + $0x40] sm:$0xff] %vm376, %v465
        %482 = vst.msk [vmem:[#allocation3 + $0x48] sm:$0xff] %vm376, %v466
        %483 = vst.msk [vmem:[#allocation3 + $0x50] sm:$0xff] %vm376, %v467
        %484 = vst.msk [vmem:[#allocation3 + $0x58] sm:$0xff] %vm376, %v468
        %485 = vst.msk [vmem:[#allocation3 + $0x60] sm:$0xff] %vm376, %v469
        %486 = vst.msk [vmem:[#allocation3 + $0x68] sm:$0xff] %vm376, %v470
        %487 = vst.msk [vmem:[#allocation3 + $0x70] sm:$0xff] %vm376, %v471
        %488 = vst.msk [vmem:[#allocation3 + $0x78] sm:$0xff] %vm376, %v472
      $region40: #{channel_attention_forward.1} parent=31 // pred_fallthru
        _
      %p489 = scmp.eq.s32.totalorder %s20, 1
      %p490 = pnand %p489, %p223
      %p491 = pneg %p490
      // Predicated region
      $region41: #{channel_attention_forward.1} parent=31 // pred_check
        _
      $region42: #{channel_attention_forward.1} parent=31 // pred_check_branch
        %493 = sbr.rel (%p490) target = $region44
      $region43: #{channel_attention_forward.1} parent=31 // pred_region
        %v494 = vld [vmem:[%s1] sm:$0xff]
        %v495 = vld [vmem:[%s1 + $0x8] sm:$0xff]
        %v496 = vld [vmem:[%s2] sm:$0xff]
        %v497 = vld [vmem:[%s2 + $0x8] sm:$0xff]
        %v498 = vld [vmem:[%s2 + $0x10] sm:$0xff]
        %v499 = vld [vmem:[%s2 + $0x18] sm:$0xff]
        %v500 = vld [vmem:[%s2 + $0x20] sm:$0xff]
        %v501 = vld [vmem:[%s2 + $0x28] sm:$0xff]
        %v502 = vld [vmem:[%s2 + $0x30] sm:$0xff]
        %v503 = vld [vmem:[%s2 + $0x38] sm:$0xff]
        %v504 = vld [vmem:[%s2 + $0x40] sm:$0xff]
        %v505 = vld [vmem:[%s2 + $0x48] sm:$0xff]
        %v506 = vld [vmem:[%s2 + $0x50] sm:$0xff]
        %v507 = vld [vmem:[%s2 + $0x58] sm:$0xff]
        %v508 = vld [vmem:[%s2 + $0x60] sm:$0xff]
        %v509 = vld [vmem:[%s2 + $0x68] sm:$0xff]
        %v510 = vld [vmem:[%s2 + $0x70] sm:$0xff]
        %v511 = vld [vmem:[%s2 + $0x78] sm:$0xff]
        %v512 = vld [vmem:[#allocation2] sm:$0xff]
        %v513 = vld [vmem:[#allocation2 + $0x8] sm:$0xff]
        %v514 = vld [vmem:[#allocation2 + $0x10] sm:$0xff]
        %v515 = vld [vmem:[#allocation2 + $0x18] sm:$0xff]
        %v516 = vld [vmem:[#allocation2 + $0x20] sm:$0xff]
        %v517 = vld [vmem:[#allocation2 + $0x28] sm:$0xff]
        %v518 = vld [vmem:[#allocation2 + $0x30] sm:$0xff]
        %v519 = vld [vmem:[#allocation2 + $0x38] sm:$0xff]
        %v520 = vld [vmem:[#allocation2 + $0x40] sm:$0xff]
        %v521 = vld [vmem:[#allocation2 + $0x48] sm:$0xff]
        %v522 = vld [vmem:[#allocation2 + $0x50] sm:$0xff]
        %v523 = vld [vmem:[#allocation2 + $0x58] sm:$0xff]
        %v524 = vld [vmem:[#allocation2 + $0x60] sm:$0xff]
        %v525 = vld [vmem:[#allocation2 + $0x68] sm:$0xff]
        %v526 = vld [vmem:[#allocation2 + $0x70] sm:$0xff]
        %v527 = vld [vmem:[#allocation2 + $0x78] sm:$0xff]
        %v528 = vmul.f32 %v512, 0.00390625
        %v529 = vmul.f32 %v513, 0.00390625
        %v530 = vmul.f32 %v514, 0.00390625
        %v531 = vmul.f32 %v515, 0.00390625
        %v532 = vmul.f32 %v516, 0.00390625
        %v533 = vmul.f32 %v517, 0.00390625
        %v534 = vmul.f32 %v518, 0.00390625
        %v535 = vmul.f32 %v519, 0.00390625
        %v536 = vmul.f32 %v520, 0.00390625
        %v537 = vmul.f32 %v521, 0.00390625
        %v538 = vmul.f32 %v522, 0.00390625
        %v539 = vmul.f32 %v523, 0.00390625
        %v540 = vmul.f32 %v524, 0.00390625
        %v541 = vmul.f32 %v525, 0.00390625
        %v542 = vmul.f32 %v526, 0.00390625
        %v543 = vmul.f32 %v527, 0.00390625
        %v544 = vld [vmem:[#allocation3] sm:$0xff]
        %v545 = vld [vmem:[#allocation3 + $0x8] sm:$0xff]
        %v546 = vld [vmem:[#allocation3 + $0x10] sm:$0xff]
        %v547 = vld [vmem:[#allocation3 + $0x18] sm:$0xff]
        %v548 = vld [vmem:[#allocation3 + $0x20] sm:$0xff]
        %v549 = vld [vmem:[#allocation3 + $0x28] sm:$0xff]
        %v550 = vld [vmem:[#allocation3 + $0x30] sm:$0xff]
        %v551 = vld [vmem:[#allocation3 + $0x38] sm:$0xff]
        %v552 = vld [vmem:[#allocation3 + $0x40] sm:$0xff]
        %v553 = vld [vmem:[#allocation3 + $0x48] sm:$0xff]
        %v554 = vld [vmem:[#allocation3 + $0x50] sm:$0xff]
        %v555 = vld [vmem:[#allocation3 + $0x58] sm:$0xff]
        %v556 = vld [vmem:[#allocation3 + $0x60] sm:$0xff]
        %v557 = vld [vmem:[#allocation3 + $0x68] sm:$0xff]
        %v558 = vld [vmem:[#allocation3 + $0x70] sm:$0xff]
        %v559 = vld [vmem:[#allocation3 + $0x78] sm:$0xff]
        %560 = vmatpush.msra.mxu0 %v543
        %561 = vmatpush.msra.mxu0 %v542
        %562 = vmatpush.msra.mxu0 %v541
        %563 = vmatpush.msra.mxu0 %v540
        %564 = vmatpush.msra.mxu0 %v539
        %565 = vmatpush.msra.mxu0 %v538
        %566 = vmatpush.msra.mxu0 %v537
        %567 = vmatpush.msra.mxu0 %v536
        %568 = vmatpush.msra.mxu0 %v535
        %569 = vmatpush.msra.mxu0 %v534
        %570 = vmatpush.msra.mxu0 %v533
        %571 = vmatpush.msra.mxu0 %v532
        %572 = vmatpush.msra.mxu0 %v531
        %573 = vmatpush.msra.mxu0 %v530
        %574 = vmatpush.msra.mxu0 %v529
        %575 = vmatpush.msra.mxu0 %v528
        %576 = vmatmul.f32.gmra.mxu0 %v494
        %v577 = vpop.f32.mrf.mxu0
        %v578 = vadd.f32 0.0, %v577
        %579 = vmatmul.f32.gmra.mxu0 %v495
        %v580 = vpop.f32.mrf.mxu0
        %v581 = vadd.f32 0.0, %v580
        %582 = vdwg.mxu0
        %v583 = vmax.f32 %v578, 0.0
        %v584 = vmax.f32 %v581, 0.0
        %585 = vmatpush.msra.mxu0 %v559
        %586 = vmatpush.msra.mxu0 %v558
        %587 = vmatpush.msra.mxu0 %v557
        %588 = vmatpush.msra.mxu0 %v556
        %589 = vmatpush.msra.mxu0 %v555
        %590 = vmatpush.msra.mxu0 %v554
        %591 = vmatpush.msra.mxu0 %v553
        %592 = vmatpush.msra.mxu0 %v552
        %593 = vmatpush.msra.mxu0 %v551
        %594 = vmatpush.msra.mxu0 %v550
        %595 = vmatpush.msra.mxu0 %v549
        %596 = vmatpush.msra.mxu0 %v548
        %597 = vmatpush.msra.mxu0 %v547
        %598 = vmatpush.msra.mxu0 %v546
        %599 = vmatpush.msra.mxu0 %v545
        %600 = vmatpush.msra.mxu0 %v544
        %601 = vmatmul.f32.gmra.mxu0 %v494
        %v602 = vpop.f32.mrf.mxu0
        %v603 = vadd.f32 0.0, %v602
        %604 = vmatmul.f32.gmra.mxu0 %v495
        %v605 = vpop.f32.mrf.mxu0
        %v606 = vadd.f32 0.0, %v605
        %607 = vdwg.mxu0
        %v608 = vmax.f32 %v603, 0.0
        %v609 = vmax.f32 %v606, 0.0
        %v610 = vadd.f32 %v583, %v608
        %v611 = vadd.f32 %v584, %v609
        %vm612 = vcmask 130048
        %v614 = vsel %vm612, %v496, 0
        %v617 = vsel %vm612, %v497, 0
        %v620 = vsel %vm612, %v498, 0
        %v623 = vsel %vm612, %v499, 0
        %v626 = vsel %vm612, %v500, 0
        %v629 = vsel %vm612, %v501, 0
        %v632 = vsel %vm612, %v502, 0
        %v635 = vsel %vm612, %v503, 0
        %v638 = vsel %vm612, %v504, 0
        %v641 = vsel %vm612, %v505, 0
        %v644 = vsel %vm612, %v506, 0
        %v647 = vsel %vm612, %v507, 0
        %v650 = vsel %vm612, %v508, 0
        %v653 = vsel %vm612, %v509, 0
        %v656 = vsel %vm612, %v510, 0
        %v659 = vsel %vm612, %v511, 0
        %661 = vmatpush.msra.mxu0 0.0
        %662 = vmatpush.msra.mxu0 0.0
        %663 = vmatpush.msra.mxu0 0.0
        %664 = vmatpush.msra.mxu0 0.0
        %665 = vmatpush.msra.mxu0 0.0
        %666 = vmatpush.msra.mxu0 0.0
        %667 = vmatpush.msra.mxu0 0.0
        %668 = vmatpush.msra.mxu0 0.0
        %669 = vmatpush.msra.mxu0 0.0
        %670 = vmatpush.msra.mxu0 0.0
        %671 = vmatpush.msra.mxu0 0.0
        %672 = vmatpush.msra.mxu0 0.0
        %673 = vmatpush.msra.mxu0 0.0
        %674 = vmatpush.msra.mxu0 0.0
        %675 = vmatpush.msra.mxu0 %v611
        %676 = vmatpush.msra.mxu0 %v610
        %677 = vmatmul.f32.gmra.mxu0 %v614
        %v678 = vpop.f32.mrf.mxu0
        %v679 = vadd.f32 0.0, %v678
        %680 = vmatmul.f32.gmra.mxu0 %v617
        %v681 = vpop.f32.mrf.mxu0
        %v682 = vadd.f32 0.0, %v681
        %683 = vmatmul.f32.gmra.mxu0 %v620
        %v684 = vpop.f32.mrf.mxu0
        %v685 = vadd.f32 0.0, %v684
        %686 = vmatmul.f32.gmra.mxu0 %v623
        %v687 = vpop.f32.mrf.mxu0
        %v688 = vadd.f32 0.0, %v687
        %689 = vmatmul.f32.gmra.mxu0 %v626
        %v690 = vpop.f32.mrf.mxu0
        %v691 = vadd.f32 0.0, %v690
        %692 = vmatmul.f32.gmra.mxu0 %v629
        %v693 = vpop.f32.mrf.mxu0
        %v694 = vadd.f32 0.0, %v693
        %695 = vmatmul.f32.gmra.mxu0 %v632
        %v696 = vpop.f32.mrf.mxu0
        %v697 = vadd.f32 0.0, %v696
        %698 = vmatmul.f32.gmra.mxu0 %v635
        %v699 = vpop.f32.mrf.mxu0
        %v700 = vadd.f32 0.0, %v699
        %701 = vmatmul.f32.gmra.mxu0 %v638
        %v702 = vpop.f32.mrf.mxu0
        %v703 = vadd.f32 0.0, %v702
        %704 = vmatmul.f32.gmra.mxu0 %v641
        %v705 = vpop.f32.mrf.mxu0
        %v706 = vadd.f32 0.0, %v705
        %707 = vmatmul.f32.gmra.mxu0 %v644
        %v708 = vpop.f32.mrf.mxu0
        %v709 = vadd.f32 0.0, %v708
        %710 = vmatmul.f32.gmra.mxu0 %v647
        %v711 = vpop.f32.mrf.mxu0
        %v712 = vadd.f32 0.0, %v711
        %713 = vmatmul.f32.gmra.mxu0 %v650
        %v714 = vpop.f32.mrf.mxu0
        %v715 = vadd.f32 0.0, %v714
        %716 = vmatmul.f32.gmra.mxu0 %v653
        %v717 = vpop.f32.mrf.mxu0
        %v718 = vadd.f32 0.0, %v717
        %719 = vmatmul.f32.gmra.mxu0 %v656
        %v720 = vpop.f32.mrf.mxu0
        %v721 = vadd.f32 0.0, %v720
        %722 = vmatmul.f32.gmra.mxu0 %v659
        %v723 = vpop.f32.mrf.mxu0
        %v724 = vadd.f32 0.0, %v723
        %725 = vdwg.mxu0
        %v726 = vsub.f32 0.0, %v679
        %v727 = vsub.f32 0.0, %v682
        %v728 = vsub.f32 0.0, %v685
        %v729 = vsub.f32 0.0, %v688
        %v730 = vsub.f32 0.0, %v691
        %v731 = vsub.f32 0.0, %v694
        %v732 = vsub.f32 0.0, %v697
        %v733 = vsub.f32 0.0, %v700
        %v734 = vsub.f32 0.0, %v703
        %v735 = vsub.f32 0.0, %v706
        %v736 = vsub.f32 0.0, %v709
        %v737 = vsub.f32 0.0, %v712
        %v738 = vsub.f32 0.0, %v715
        %v739 = vsub.f32 0.0, %v718
        %v740 = vsub.f32 0.0, %v721
        %v741 = vsub.f32 0.0, %v724
        %v742 = vmul.f32 %v726, 1.442695
        %v743 = vpow.pop %v742
        %v744 = vmul.f32 %v727, 1.442695
        %v745 = vpow.pop %v744
        %v746 = vmul.f32 %v728, 1.442695
        %v747 = vpow.pop %v746
        %v748 = vmul.f32 %v729, 1.442695
        %v749 = vpow.pop %v748
        %v750 = vmul.f32 %v730, 1.442695
        %v751 = vpow.pop %v750
        %v752 = vmul.f32 %v731, 1.442695
        %v753 = vpow.pop %v752
        %v754 = vmul.f32 %v732, 1.442695
        %v755 = vpow.pop %v754
        %v756 = vmul.f32 %v733, 1.442695
        %v757 = vpow.pop %v756
        %v758 = vmul.f32 %v734, 1.442695
        %v759 = vpow.pop %v758
        %v760 = vmul.f32 %v735, 1.442695
        %v761 = vpow.pop %v760
        %v762 = vmul.f32 %v736, 1.442695
        %v763 = vpow.pop %v762
        %v764 = vmul.f32 %v737, 1.442695
        %v765 = vpow.pop %v764
        %v766 = vmul.f32 %v738, 1.442695
        %v767 = vpow.pop %v766
        %v768 = vmul.f32 %v739, 1.442695
        %v769 = vpow.pop %v768
        %v770 = vmul.f32 %v740, 1.442695
        %v771 = vpow.pop %v770
        %v772 = vmul.f32 %v741, 1.442695
        %v773 = vpow.pop %v772
        %v774 = vadd.f32 %v743, 1.0
        %v775 = vadd.f32 %v745, 1.0
        %v776 = vadd.f32 %v747, 1.0
        %v777 = vadd.f32 %v749, 1.0
        %v778 = vadd.f32 %v751, 1.0
        %v779 = vadd.f32 %v753, 1.0
        %v780 = vadd.f32 %v755, 1.0
        %v781 = vadd.f32 %v757, 1.0
        %v782 = vadd.f32 %v759, 1.0
        %v783 = vadd.f32 %v761, 1.0
        %v784 = vadd.f32 %v763, 1.0
        %v785 = vadd.f32 %v765, 1.0
        %v786 = vadd.f32 %v767, 1.0
        %v787 = vadd.f32 %v769, 1.0
        %v788 = vadd.f32 %v771, 1.0
        %v789 = vadd.f32 %v773, 1.0
        %v790 = vrcp.pop %v774
        %v791 = vmul.f32 %v774, %v790
        %v792 = vsub.f32 1.0, %v791
        %v793 = vmul.f32 %v790, %v792
        %v794 = vadd.f32 %v790, %v793
        %vm795 = vweird.f32 %v774
        %vm796 = vweird.f32 %v790
        %vm797 = vmor %vm795, %vm796
        %v798 = vsel %vm797, %v790, %v794
        %v799 = vand.u32 2147483647, %v774
        %vm800 = vcmp.eq.f32.partialorder %v799, 8.507059e+37
        %v801 = vand.u32 %v774, 2147483648
        %v802 = vor.u32 1.1754944e-38, %v801
        %v803 = vsel %vm800, %v802, %v798
        %v804 = vmul.f32 1.0, %v803
        %v805 = vrcp.pop %v775
        %v806 = vmul.f32 %v775, %v805
        %v807 = vsub.f32 1.0, %v806
        %v808 = vmul.f32 %v805, %v807
        %v809 = vadd.f32 %v805, %v808
        %vm810 = vweird.f32 %v775
        %vm811 = vweird.f32 %v805
        %vm812 = vmor %vm810, %vm811
        %v813 = vsel %vm812, %v805, %v809
        %v814 = vand.u32 2147483647, %v775
        %vm815 = vcmp.eq.f32.partialorder %v814, 8.507059e+37
        %v816 = vand.u32 %v775, 2147483648
        %v817 = vor.u32 1.1754944e-38, %v816
        %v818 = vsel %vm815, %v817, %v813
        %v819 = vmul.f32 1.0, %v818
        %v820 = vrcp.pop %v776
        %v821 = vmul.f32 %v776, %v820
        %v822 = vsub.f32 1.0, %v821
        %v823 = vmul.f32 %v820, %v822
        %v824 = vadd.f32 %v820, %v823
        %vm825 = vweird.f32 %v776
        %vm826 = vweird.f32 %v820
        %vm827 = vmor %vm825, %vm826
        %v828 = vsel %vm827, %v820, %v824
        %v829 = vand.u32 2147483647, %v776
        %vm830 = vcmp.eq.f32.partialorder %v829, 8.507059e+37
        %v831 = vand.u32 %v776, 2147483648
        %v832 = vor.u32 1.1754944e-38, %v831
        %v833 = vsel %vm830, %v832, %v828
        %v834 = vmul.f32 1.0, %v833
        %v835 = vrcp.pop %v777
        %v836 = vmul.f32 %v777, %v835
        %v837 = vsub.f32 1.0, %v836
        %v838 = vmul.f32 %v835, %v837
        %v839 = vadd.f32 %v835, %v838
        %vm840 = vweird.f32 %v777
        %vm841 = vweird.f32 %v835
        %vm842 = vmor %vm840, %vm841
        %v843 = vsel %vm842, %v835, %v839
        %v844 = vand.u32 2147483647, %v777
        %vm845 = vcmp.eq.f32.partialorder %v844, 8.507059e+37
        %v846 = vand.u32 %v777, 2147483648
        %v847 = vor.u32 1.1754944e-38, %v846
        %v848 = vsel %vm845, %v847, %v843
        %v849 = vmul.f32 1.0, %v848
        %v850 = vrcp.pop %v778
        %v851 = vmul.f32 %v778, %v850
        %v852 = vsub.f32 1.0, %v851
        %v853 = vmul.f32 %v850, %v852
        %v854 = vadd.f32 %v850, %v853
        %vm855 = vweird.f32 %v778
        %vm856 = vweird.f32 %v850
        %vm857 = vmor %vm855, %vm856
        %v858 = vsel %vm857, %v850, %v854
        %v859 = vand.u32 2147483647, %v778
        %vm860 = vcmp.eq.f32.partialorder %v859, 8.507059e+37
        %v861 = vand.u32 %v778, 2147483648
        %v862 = vor.u32 1.1754944e-38, %v861
        %v863 = vsel %vm860, %v862, %v858
        %v864 = vmul.f32 1.0, %v863
        %v865 = vrcp.pop %v779
        %v866 = vmul.f32 %v779, %v865
        %v867 = vsub.f32 1.0, %v866
        %v868 = vmul.f32 %v865, %v867
        %v869 = vadd.f32 %v865, %v868
        %vm870 = vweird.f32 %v779
        %vm871 = vweird.f32 %v865
        %vm872 = vmor %vm870, %vm871
        %v873 = vsel %vm872, %v865, %v869
        %v874 = vand.u32 2147483647, %v779
        %vm875 = vcmp.eq.f32.partialorder %v874, 8.507059e+37
        %v876 = vand.u32 %v779, 2147483648
        %v877 = vor.u32 1.1754944e-38, %v876
        %v878 = vsel %vm875, %v877, %v873
        %v879 = vmul.f32 1.0, %v878
        %v880 = vrcp.pop %v780
        %v881 = vmul.f32 %v780, %v880
        %v882 = vsub.f32 1.0, %v881
        %v883 = vmul.f32 %v880, %v882
        %v884 = vadd.f32 %v880, %v883
        %vm885 = vweird.f32 %v780
        %vm886 = vweird.f32 %v880
        %vm887 = vmor %vm885, %vm886
        %v888 = vsel %vm887, %v880, %v884
        %v889 = vand.u32 2147483647, %v780
        %vm890 = vcmp.eq.f32.partialorder %v889, 8.507059e+37
        %v891 = vand.u32 %v780, 2147483648
        %v892 = vor.u32 1.1754944e-38, %v891
        %v893 = vsel %vm890, %v892, %v888
        %v894 = vmul.f32 1.0, %v893
        %v895 = vrcp.pop %v781
        %v896 = vmul.f32 %v781, %v895
        %v897 = vsub.f32 1.0, %v896
        %v898 = vmul.f32 %v895, %v897
        %v899 = vadd.f32 %v895, %v898
        %vm900 = vweird.f32 %v781
        %vm901 = vweird.f32 %v895
        %vm902 = vmor %vm900, %vm901
        %v903 = vsel %vm902, %v895, %v899
        %v904 = vand.u32 2147483647, %v781
        %vm905 = vcmp.eq.f32.partialorder %v904, 8.507059e+37
        %v906 = vand.u32 %v781, 2147483648
        %v907 = vor.u32 1.1754944e-38, %v906
        %v908 = vsel %vm905, %v907, %v903
        %v909 = vmul.f32 1.0, %v908
        %v910 = vrcp.pop %v782
        %v911 = vmul.f32 %v782, %v910
        %v912 = vsub.f32 1.0, %v911
        %v913 = vmul.f32 %v910, %v912
        %v914 = vadd.f32 %v910, %v913
        %vm915 = vweird.f32 %v782
        %vm916 = vweird.f32 %v910
        %vm917 = vmor %vm915, %vm916
        %v918 = vsel %vm917, %v910, %v914
        %v919 = vand.u32 2147483647, %v782
        %vm920 = vcmp.eq.f32.partialorder %v919, 8.507059e+37
        %v921 = vand.u32 %v782, 2147483648
        %v922 = vor.u32 1.1754944e-38, %v921
        %v923 = vsel %vm920, %v922, %v918
        %v924 = vmul.f32 1.0, %v923
        %v925 = vrcp.pop %v783
        %v926 = vmul.f32 %v783, %v925
        %v927 = vsub.f32 1.0, %v926
        %v928 = vmul.f32 %v925, %v927
        %v929 = vadd.f32 %v925, %v928
        %vm930 = vweird.f32 %v783
        %vm931 = vweird.f32 %v925
        %vm932 = vmor %vm930, %vm931
        %v933 = vsel %vm932, %v925, %v929
        %v934 = vand.u32 2147483647, %v783
        %vm935 = vcmp.eq.f32.partialorder %v934, 8.507059e+37
        %v936 = vand.u32 %v783, 2147483648
        %v937 = vor.u32 1.1754944e-38, %v936
        %v938 = vsel %vm935, %v937, %v933
        %v939 = vmul.f32 1.0, %v938
        %v940 = vrcp.pop %v784
        %v941 = vmul.f32 %v784, %v940
        %v942 = vsub.f32 1.0, %v941
        %v943 = vmul.f32 %v940, %v942
        %v944 = vadd.f32 %v940, %v943
        %vm945 = vweird.f32 %v784
        %vm946 = vweird.f32 %v940
        %vm947 = vmor %vm945, %vm946
        %v948 = vsel %vm947, %v940, %v944
        %v949 = vand.u32 2147483647, %v784
        %vm950 = vcmp.eq.f32.partialorder %v949, 8.507059e+37
        %v951 = vand.u32 %v784, 2147483648
        %v952 = vor.u32 1.1754944e-38, %v951
        %v953 = vsel %vm950, %v952, %v948
        %v954 = vmul.f32 1.0, %v953
        %v955 = vrcp.pop %v785
        %v956 = vmul.f32 %v785, %v955
        %v957 = vsub.f32 1.0, %v956
        %v958 = vmul.f32 %v955, %v957
        %v959 = vadd.f32 %v955, %v958
        %vm960 = vweird.f32 %v785
        %vm961 = vweird.f32 %v955
        %vm962 = vmor %vm960, %vm961
        %v963 = vsel %vm962, %v955, %v959
        %v964 = vand.u32 2147483647, %v785
        %vm965 = vcmp.eq.f32.partialorder %v964, 8.507059e+37
        %v966 = vand.u32 %v785, 2147483648
        %v967 = vor.u32 1.1754944e-38, %v966
        %v968 = vsel %vm965, %v967, %v963
        %v969 = vmul.f32 1.0, %v968
        %v970 = vrcp.pop %v786
        %v971 = vmul.f32 %v786, %v970
        %v972 = vsub.f32 1.0, %v971
        %v973 = vmul.f32 %v970, %v972
        %v974 = vadd.f32 %v970, %v973
        %vm975 = vweird.f32 %v786
        %vm976 = vweird.f32 %v970
        %vm977 = vmor %vm975, %vm976
        %v978 = vsel %vm977, %v970, %v974
        %v979 = vand.u32 2147483647, %v786
        %vm980 = vcmp.eq.f32.partialorder %v979, 8.507059e+37
        %v981 = vand.u32 %v786, 2147483648
        %v982 = vor.u32 1.1754944e-38, %v981
        %v983 = vsel %vm980, %v982, %v978
        %v984 = vmul.f32 1.0, %v983
        %v985 = vrcp.pop %v787
        %v986 = vmul.f32 %v787, %v985
        %v987 = vsub.f32 1.0, %v986
        %v988 = vmul.f32 %v985, %v987
        %v989 = vadd.f32 %v985, %v988
        %vm990 = vweird.f32 %v787
        %vm991 = vweird.f32 %v985
        %vm992 = vmor %vm990, %vm991
        %v993 = vsel %vm992, %v985, %v989
        %v994 = vand.u32 2147483647, %v787
        %vm995 = vcmp.eq.f32.partialorder %v994, 8.507059e+37
        %v996 = vand.u32 %v787, 2147483648
        %v997 = vor.u32 1.1754944e-38, %v996
        %v998 = vsel %vm995, %v997, %v993
        %v999 = vmul.f32 1.0, %v998
        %v1000 = vrcp.pop %v788
        %v1001 = vmul.f32 %v788, %v1000
        %v1002 = vsub.f32 1.0, %v1001
        %v1003 = vmul.f32 %v1000, %v1002
        %v1004 = vadd.f32 %v1000, %v1003
        %vm1005 = vweird.f32 %v788
        %vm1006 = vweird.f32 %v1000
        %vm1007 = vmor %vm1005, %vm1006
        %v1008 = vsel %vm1007, %v1000, %v1004
        %v1009 = vand.u32 2147483647, %v788
        %vm1010 = vcmp.eq.f32.partialorder %v1009, 8.507059e+37
        %v1011 = vand.u32 %v788, 2147483648
        %v1012 = vor.u32 1.1754944e-38, %v1011
        %v1013 = vsel %vm1010, %v1012, %v1008
        %v1014 = vmul.f32 1.0, %v1013
        %v1015 = vrcp.pop %v789
        %v1016 = vmul.f32 %v789, %v1015
        %v1017 = vsub.f32 1.0, %v1016
        %v1018 = vmul.f32 %v1015, %v1017
        %v1019 = vadd.f32 %v1015, %v1018
        %vm1020 = vweird.f32 %v789
        %vm1021 = vweird.f32 %v1015
        %vm1022 = vmor %vm1020, %vm1021
        %v1023 = vsel %vm1022, %v1015, %v1019
        %v1024 = vand.u32 2147483647, %v789
        %vm1025 = vcmp.eq.f32.partialorder %v1024, 8.507059e+37
        %v1026 = vand.u32 %v789, 2147483648
        %v1027 = vor.u32 1.1754944e-38, %v1026
        %v1028 = vsel %vm1025, %v1027, %v1023
        %v1029 = vmul.f32 1.0, %v1028
        %vm1030 = vcmask 7168
        %1031 = vst.msk [vmem:[#allocation4] sm:$0xff] %vm1030, %v804
        %1032 = vst.msk [vmem:[#allocation4 + $0x8] sm:$0xff] %vm1030, %v819
        %1033 = vst.msk [vmem:[#allocation4 + $0x10] sm:$0xff] %vm1030, %v834
        %1034 = vst.msk [vmem:[#allocation4 + $0x18] sm:$0xff] %vm1030, %v849
        %1035 = vst.msk [vmem:[#allocation4 + $0x20] sm:$0xff] %vm1030, %v864
        %1036 = vst.msk [vmem:[#allocation4 + $0x28] sm:$0xff] %vm1030, %v879
        %1037 = vst.msk [vmem:[#allocation4 + $0x30] sm:$0xff] %vm1030, %v894
        %1038 = vst.msk [vmem:[#allocation4 + $0x38] sm:$0xff] %vm1030, %v909
        %1039 = vst.msk [vmem:[#allocation4 + $0x40] sm:$0xff] %vm1030, %v924
        %1040 = vst.msk [vmem:[#allocation4 + $0x48] sm:$0xff] %vm1030, %v939
        %1041 = vst.msk [vmem:[#allocation4 + $0x50] sm:$0xff] %vm1030, %v954
        %1042 = vst.msk [vmem:[#allocation4 + $0x58] sm:$0xff] %vm1030, %v969
        %1043 = vst.msk [vmem:[#allocation4 + $0x60] sm:$0xff] %vm1030, %v984
        %1044 = vst.msk [vmem:[#allocation4 + $0x68] sm:$0xff] %vm1030, %v999
        %1045 = vst.msk [vmem:[#allocation4 + $0x70] sm:$0xff] %vm1030, %v1014
        %1046 = vst.msk [vmem:[#allocation4 + $0x78] sm:$0xff] %vm1030, %v1029
      $region44: #{channel_attention_forward.1} parent=31 // pred_fallthru
        _
      // Predicated region
      $region45: #{channel_attention_forward.1} parent=31 // pred_check
        %p1047 = pneg %p489
      $region46: #{channel_attention_forward.1} parent=31 // pred_check_branch
        %1049 = sbr.rel (%p1047) target = $region48
      $region47: #{channel_attention_forward.1} parent=31 // pred_region
        %v1050 = vld [vmem:[%s208] sm:$0xff]
        %v1051 = vld [vmem:[%s208 + $0x8] sm:$0xff]
        %v1052 = vld [vmem:[%s208 + $0x10] sm:$0xff]
        %v1053 = vld [vmem:[%s208 + $0x18] sm:$0xff]
        %v1054 = vld [vmem:[%s208 + $0x20] sm:$0xff]
        %v1055 = vld [vmem:[%s208 + $0x28] sm:$0xff]
        %v1056 = vld [vmem:[%s208 + $0x30] sm:$0xff]
        %v1057 = vld [vmem:[%s208 + $0x38] sm:$0xff]
        %v1058 = vld [vmem:[%s208 + $0x40] sm:$0xff]
        %v1059 = vld [vmem:[%s208 + $0x48] sm:$0xff]
        %v1060 = vld [vmem:[%s208 + $0x50] sm:$0xff]
        %v1061 = vld [vmem:[%s208 + $0x58] sm:$0xff]
        %v1062 = vld [vmem:[%s208 + $0x60] sm:$0xff]
        %v1063 = vld [vmem:[%s208 + $0x68] sm:$0xff]
        %v1064 = vld [vmem:[%s208 + $0x70] sm:$0xff]
        %v1065 = vld [vmem:[%s208 + $0x78] sm:$0xff]
        %v1066 = vld [vmem:[%s208 + $0x80] sm:$0xff]
        %v1067 = vld [vmem:[%s208 + $0x88] sm:$0xff]
        %v1068 = vld [vmem:[%s208 + $0x90] sm:$0xff]
        %v1069 = vld [vmem:[%s208 + $0x98] sm:$0xff]
        %v1070 = vld [vmem:[%s208 + $0xa0] sm:$0xff]
        %v1071 = vld [vmem:[%s208 + $0xa8] sm:$0xff]
        %v1072 = vld [vmem:[%s208 + $0xb0] sm:$0xff]
        %v1073 = vld [vmem:[%s208 + $0xb8] sm:$0xff]
        %v1074 = vld [vmem:[%s208 + $0xc0] sm:$0xff]
        %v1075 = vld [vmem:[%s208 + $0xc8] sm:$0xff]
        %v1076 = vld [vmem:[%s208 + $0xd0] sm:$0xff]
        %v1077 = vld [vmem:[%s208 + $0xd8] sm:$0xff]
        %v1078 = vld [vmem:[%s208 + $0xe0] sm:$0xff]
        %v1079 = vld [vmem:[%s208 + $0xe8] sm:$0xff]
        %v1080 = vld [vmem:[%s208 + $0xf0] sm:$0xff]
        %v1081 = vld [vmem:[%s208 + $0xf8] sm:$0xff]
        %v1082 = vld [vmem:[#allocation4] sm:$0xff]
        %v1083 = vld [vmem:[#allocation4 + $0x8] sm:$0xff]
        %v1084 = vld [vmem:[#allocation4 + $0x10] sm:$0xff]
        %v1085 = vld [vmem:[#allocation4 + $0x18] sm:$0xff]
        %v1086 = vld [vmem:[#allocation4 + $0x20] sm:$0xff]
        %v1087 = vld [vmem:[#allocation4 + $0x28] sm:$0xff]
        %v1088 = vld [vmem:[#allocation4 + $0x30] sm:$0xff]
        %v1089 = vld [vmem:[#allocation4 + $0x38] sm:$0xff]
        %v1090 = vld [vmem:[#allocation4 + $0x40] sm:$0xff]
        %v1091 = vld [vmem:[#allocation4 + $0x48] sm:$0xff]
        %v1092 = vld [vmem:[#allocation4 + $0x50] sm:$0xff]
        %v1093 = vld [vmem:[#allocation4 + $0x58] sm:$0xff]
        %v1094 = vld [vmem:[#allocation4 + $0x60] sm:$0xff]
        %v1095 = vld [vmem:[#allocation4 + $0x68] sm:$0xff]
        %v1096 = vld [vmem:[#allocation4 + $0x70] sm:$0xff]
        %v1097 = vld [vmem:[#allocation4 + $0x78] sm:$0xff]
        %1099 = vset.pattern.permute.xlu0 0
        %1100 = vperm.xlu0 %1099, %v1082
        %v1101 = vpop.permute.xlu0 %1100
        %1104 = vset.pattern.permute.xlu0 0
        %1105 = vperm.xlu0 %1104, %v1083
        %v1106 = vpop.permute.xlu0 %1105
        %1109 = vset.pattern.permute.xlu0 0
        %1110 = vperm.xlu0 %1109, %v1084
        %v1111 = vpop.permute.xlu0 %1110
        %1114 = vset.pattern.permute.xlu0 0
        %1115 = vperm.xlu0 %1114, %v1085
        %v1116 = vpop.permute.xlu0 %1115
        %1119 = vset.pattern.permute.xlu0 0
        %1120 = vperm.xlu0 %1119, %v1086
        %v1121 = vpop.permute.xlu0 %1120
        %1124 = vset.pattern.permute.xlu0 0
        %1125 = vperm.xlu0 %1124, %v1087
        %v1126 = vpop.permute.xlu0 %1125
        %1129 = vset.pattern.permute.xlu0 0
        %1130 = vperm.xlu0 %1129, %v1088
        %v1131 = vpop.permute.xlu0 %1130
        %1134 = vset.pattern.permute.xlu0 0
        %1135 = vperm.xlu0 %1134, %v1089
        %v1136 = vpop.permute.xlu0 %1135
        %1139 = vset.pattern.permute.xlu0 0
        %1140 = vperm.xlu0 %1139, %v1090
        %v1141 = vpop.permute.xlu0 %1140
        %1144 = vset.pattern.permute.xlu0 0
        %1145 = vperm.xlu0 %1144, %v1091
        %v1146 = vpop.permute.xlu0 %1145
        %1149 = vset.pattern.permute.xlu0 0
        %1150 = vperm.xlu0 %1149, %v1092
        %v1151 = vpop.permute.xlu0 %1150
        %1154 = vset.pattern.permute.xlu0 0
        %1155 = vperm.xlu0 %1154, %v1093
        %v1156 = vpop.permute.xlu0 %1155
        %1159 = vset.pattern.permute.xlu0 0
        %1160 = vperm.xlu0 %1159, %v1094
        %v1161 = vpop.permute.xlu0 %1160
        %1164 = vset.pattern.permute.xlu0 0
        %1165 = vperm.xlu0 %1164, %v1095
        %v1166 = vpop.permute.xlu0 %1165
        %1169 = vset.pattern.permute.xlu0 0
        %1170 = vperm.xlu0 %1169, %v1096
        %v1171 = vpop.permute.xlu0 %1170
        %1174 = vset.pattern.permute.xlu0 0
        %1175 = vperm.xlu0 %1174, %v1097
        %v1176 = vpop.permute.xlu0 %1175
        %v1178 = vmul.f32 %v1050, %v1101
        %v1179 = vmul.f32 %v1051, %v1101
        %v1180 = vmul.f32 %v1052, %v1106
        %v1181 = vmul.f32 %v1053, %v1106
        %v1182 = vmul.f32 %v1054, %v1111
        %v1183 = vmul.f32 %v1055, %v1111
        %v1184 = vmul.f32 %v1056, %v1116
        %v1185 = vmul.f32 %v1057, %v1116
        %v1186 = vmul.f32 %v1058, %v1121
        %v1187 = vmul.f32 %v1059, %v1121
        %v1188 = vmul.f32 %v1060, %v1126
        %v1189 = vmul.f32 %v1061, %v1126
        %v1190 = vmul.f32 %v1062, %v1131
        %v1191 = vmul.f32 %v1063, %v1131
        %v1192 = vmul.f32 %v1064, %v1136
        %v1193 = vmul.f32 %v1065, %v1136
        %v1194 = vmul.f32 %v1066, %v1141
        %v1195 = vmul.f32 %v1067, %v1141
        %v1196 = vmul.f32 %v1068, %v1146
        %v1197 = vmul.f32 %v1069, %v1146
        %v1198 = vmul.f32 %v1070, %v1151
        %v1199 = vmul.f32 %v1071, %v1151
        %v1200 = vmul.f32 %v1072, %v1156
        %v1201 = vmul.f32 %v1073, %v1156
        %v1202 = vmul.f32 %v1074, %v1161
        %v1203 = vmul.f32 %v1075, %v1161
        %v1204 = vmul.f32 %v1076, %v1166
        %v1205 = vmul.f32 %v1077, %v1166
        %v1206 = vmul.f32 %v1078, %v1171
        %v1207 = vmul.f32 %v1079, %v1171
        %v1208 = vmul.f32 %v1080, %v1176
        %v1209 = vmul.f32 %v1081, %v1176
        %1210 = vst [vmem:[%s219] sm:$0xff] %v1178
        %1211 = vst [vmem:[%s219 + $0x8] sm:$0xff] %v1179
        %1212 = vst [vmem:[%s219 + $0x10] sm:$0xff] %v1180
        %1213 = vst [vmem:[%s219 + $0x18] sm:$0xff] %v1181
        %1214 = vst [vmem:[%s219 + $0x20] sm:$0xff] %v1182
        %1215 = vst [vmem:[%s219 + $0x28] sm:$0xff] %v1183
        %1216 = vst [vmem:[%s219 + $0x30] sm:$0xff] %v1184
        %1217 = vst [vmem:[%s219 + $0x38] sm:$0xff] %v1185
        %1218 = vst [vmem:[%s219 + $0x40] sm:$0xff] %v1186
        %1219 = vst [vmem:[%s219 + $0x48] sm:$0xff] %v1187
        %1220 = vst [vmem:[%s219 + $0x50] sm:$0xff] %v1188
        %1221 = vst [vmem:[%s219 + $0x58] sm:$0xff] %v1189
        %1222 = vst [vmem:[%s219 + $0x60] sm:$0xff] %v1190
        %1223 = vst [vmem:[%s219 + $0x68] sm:$0xff] %v1191
        %1224 = vst [vmem:[%s219 + $0x70] sm:$0xff] %v1192
        %1225 = vst [vmem:[%s219 + $0x78] sm:$0xff] %v1193
        %1226 = vst [vmem:[%s219 + $0x80] sm:$0xff] %v1194
        %1227 = vst [vmem:[%s219 + $0x88] sm:$0xff] %v1195
        %1228 = vst [vmem:[%s219 + $0x90] sm:$0xff] %v1196
        %1229 = vst [vmem:[%s219 + $0x98] sm:$0xff] %v1197
        %1230 = vst [vmem:[%s219 + $0xa0] sm:$0xff] %v1198
        %1231 = vst [vmem:[%s219 + $0xa8] sm:$0xff] %v1199
        %1232 = vst [vmem:[%s219 + $0xb0] sm:$0xff] %v1200
        %1233 = vst [vmem:[%s219 + $0xb8] sm:$0xff] %v1201
        %1234 = vst [vmem:[%s219 + $0xc0] sm:$0xff] %v1202
        %1235 = vst [vmem:[%s219 + $0xc8] sm:$0xff] %v1203
        %1236 = vst [vmem:[%s219 + $0xd0] sm:$0xff] %v1204
        %1237 = vst [vmem:[%s219 + $0xd8] sm:$0xff] %v1205
        %1238 = vst [vmem:[%s219 + $0xe0] sm:$0xff] %v1206
        %1239 = vst [vmem:[%s219 + $0xe8] sm:$0xff] %v1207
        %1240 = vst [vmem:[%s219 + $0xf0] sm:$0xff] %v1208
        %1241 = vst [vmem:[%s219 + $0xf8] sm:$0xff] %v1209
      $region48: #{channel_attention_forward.1} parent=31 // pred_fallthru
        _
      %s1242 = smul.u32 %s21, %s20
      %s1243 = smul.u32 2, %s1242
      %p1244 = scmp.lt.s32.totalorder %s19, 1
      %s1245 = scalar_select %p1244, %s19, 1
      %p1246 = scmp.lt.s32.totalorder %s1243, 1
      %s1247 = scalar_select %p1246, %s1243, 1
      %s1248 = smul.addr %s1245, 32
      %s1249 = sadd.s32 %s1247, %s1248
      %s1250 = smul.addr %s1249, 8
      %s1251 = scalar_lea.vmem %s3, %s1250
      // Predicated region
      $region49: #{channel_attention_forward.1} parent=31 // pred_check
        %p1252 = pneg %p125
      $region50: #{channel_attention_forward.1} parent=31 // pred_check_branch
        %1254 = sbr.rel (%p1252) target = $region52
      $region51: #{channel_attention_forward.1} parent=31 // pred_region
        %s1255 = smul.u32 %s21, %s20
        %s1256 = smul.u32 2, %s1255
      $region52: #{channel_attention_forward.1} parent=31 // pred_fallthru
        _
    $region32: #{channel_attention_forward.1} parent=5 // pred_fallthru
      _
    %p1257 = scmp.le.s32.totalorder 2, %s9
    // Predicated region
    $region53: #{channel_attention_forward.1} parent=5 // pred_check
      %p1258 = pneg %p1257
    $region54: #{channel_attention_forward.1} parent=5 // pred_check_branch
      %1260 = sbr.rel (%p1258) target = $region56
    $region55: #{channel_attention_forward.1} parent=5 // pred_region
      %s1261 = ssub.s32 %s9, 2
      // Predicated region
      $region57: #{channel_attention_forward.1} parent=55 // pred_check
        %p1262 = pneg %p131
      $region58: #{channel_attention_forward.1} parent=55 // pred_check_branch
        %1264 = sbr.rel (%p1262) target = $region60
      $region59: #{channel_attention_forward.1} parent=55 // pred_region
        %s1265 = smul.u32 %s24, %s23
        %s1266 = smul.u32 2, %s1265
        %p1267 = scmp.lt.s32.totalorder %s22, 1
        %s1268 = scalar_select %p1267, %s22, 1
        %p1269 = scmp.lt.s32.totalorder %s1266, 1
        %s1270 = scalar_select %p1269, %s1266, 1
        %s1271 = smul.addr %s1268, 32
        %s1272 = sadd.s32 %s1270, %s1271
        %s1273 = smul.addr %s1272, 8
        %s1274 = scalar_lea.vmem %s3, %s1273
      $region60: #{channel_attention_forward.1} parent=55 // pred_fallthru
        _
    $region56: #{channel_attention_forward.1} parent=5 // pred_fallthru
      _
  $region6: #{channel_attention_forward.1} parent=0 // loop_footer
    %s13 = sadd.s32 1, %s9
  $region7: #{channel_attention_forward.1} parent=0 // loop_footer_branch
    %8 = sbr.rel target = $region3
  $region8: #{channel_attention_forward.1} parent=0 // loop_exit
    _

</llo_original>
